<compile_context>
chip_gen: v7x
topology: tpu7x:2x2x1
jax: 0.10.0
libtpu: 0.0.40
codegen_flags: <defaults>
</compile_context>

<pallas_src>
import jax
import jax.numpy as jnp
from jax.experimental import pallas as pl
from jax.experimental.pallas import tpu as pltpu

LANE = 128                   # TPU lane width
SUBLANE = 8                  # f32 sublane packing
TILE_R_MAX = 8192            # 8192*128*4B = 4 MiB per f32 input per pipeline buffer
VMEM_LIMIT_BYTES = 40 << 20  # 2 inputs x 2 buffers x 4 MiB + elementwise temporaries


def _detect_core_split():
    """Number of TensorCores to split the row blocks over + core-axis semantics."""
    try:
        kind = jax.devices()[0].device_kind.lower()
        if "v7" in kind or "tpu7" in kind:
            return 2, pltpu.CORE_PARALLEL     # 2 TensorCores per chip
        if "v4" in kind or "v5p" in kind:
            return 2, pltpu.PARALLEL          # megacore pair
    except Exception:
        pass
    return 1, None                            # single TensorCore (v5e / v6e)


_NUM_CORES, _CORE_SEM = _detect_core_split()


def _round_up(v, m):
    return (v + m - 1) // m * m


def _row_align(dtype):
    # Native sublane tiling: f32 -> 8, bf16 -> 16, int8/bool -> 32 rows.
    itemsize = jnp.dtype(dtype).itemsize
    return max(SUBLANE, SUBLANE * 4 // max(itemsize, 1))


def _plain_dice_sums(x, t):
    s = jax.nn.sigmoid(x.astype(jnp.float32))
    tf = t.astype(jnp.float32)
    return jnp.sum(s * tf), jnp.sum(s), jnp.sum(tf)


def dice_loss(input, target, smooth=1.0):
    """JAX/Pallas equivalent of DiceLoss.forward(input, target)."""
    n = input.size
    x = input.reshape(-1)
    t = target.reshape(-1)

    # Tiny inputs: single-step pallas_call launch overhead dominates -> plain XLA.
    if n < SUBLANE * LANE:
        intersection, isum, tsum = _plain_dice_sums(x, t)
        return 1.0 - (2.0 * intersection + smooth) / (isum + tsum + smooth)

    # Sub-lane tail (< 128 elements, only when n % 128 != 0): fold in with plain
    # JAX on a tiny slice instead of padding (and copying) the whole input.
    rem = n % LANE
    rows = n // LANE
    if rem:
        tail = _plain_dice_sums(x[rows * LANE:], t[rows * LANE:])
        # Prefix slice materializes a copy only in this (rare) unaligned case.
        x = x[: rows * LANE]
        t = t[: rows * LANE]
    else:
        tail = None

    x2 = x.reshape(rows, LANE)   # free view when n % 128 == 0
    t2 = t.reshape(rows, LANE)

    # Adaptive row tile: big tiles for big inputs, near-exact for small ones.
    row_align = max(_row_align(x2.dtype), _row_align(t2.dtype))
    tile_r = min(TILE_R_MAX, _round_up(rows, row_align))
    nblocks = pl.cdiv(rows, tile_r)
    num_cores = _NUM_CORES if nblocks > 1 else 1
    blocks_per_core = pl.cdiv(nblocks, num_cores)
    nblocks_padded = blocks_per_core * num_cores   # phantom trailing block possible (2-core only)

    if nblocks_padded == nblocks:
        in_idx = lambda p, r, _bpc=blocks_per_core: (p * _bpc + r, 0)
    else:
        # Clamp the phantom block into range; its contribution is masked to zero.
        in_idx = lambda p, r, _bpc=blocks_per_core, _nb=nblocks: (
            jnp.minimum(p * _bpc + r, _nb - 1), 0)

    def kernel(x_ref, t_ref, acc_ref):
        p = pl.program_id(0)
        r = pl.program_id(1)

        @pl.when(r == 0)
        def _init():
            acc_ref[...] = jnp.zeros_like(acc_ref)

        xb = x_ref[...].astype(jnp.float32)
        tb = t_ref[...].astype(jnp.float32)
        # Single EUP transcendental per element, no f32 divide:
        # sigmoid(x) == 0.5 * tanh(x / 2) + 0.5
        sb = 0.5 * jnp.tanh(0.5 * xb) + 0.5

        def accumulate(s_, t_):
            sub = (tile_r // SUBLANE, SUBLANE, LANE)
            # Sublane-aligned reshape (pure view) + reduce over the major axis
            # -> VPU vreg adds only; no per-step XLU reductions.
            acc_ref[0, 0, :, :] += jnp.sum((s_ * t_).reshape(sub), axis=0)  # intersection
            acc_ref[0, 1, :, :] += jnp.sum(s_.reshape(sub), axis=0)         # sum(sigmoid(x))
            acc_ref[0, 2, :, :] += jnp.sum(t_.reshape(sub), axis=0)         # sum(target)

        # Rows of this block that lie inside the real (rows, 128) array.
        valid = rows - (p * blocks_per_core + r) * tile_r

        @pl.when(valid >= tile_r)          # full block: no masking cost
        def _full():
            accumulate(sb, tb)

        @pl.when(valid < tile_r)           # ragged / phantom block: mask stale rows
        def _ragged():
            row_ids = jax.lax.broadcasted_iota(jnp.int32, (tile_r, LANE), 0)
            m = row_ids < valid
            accumulate(jnp.where(m, sb, 0.0), jnp.where(m, tb, 0.0))

    in_spec = pl.BlockSpec((tile_r, LANE), in_idx)
    out_spec = pl.BlockSpec((1, 3, SUBLANE, LANE), lambda p, r: (p, 0, 0, 0))

    if num_cores > 1:
        dim_sem = (_CORE_SEM, pltpu.ARBITRARY)
    else:
        dim_sem = ("arbitrary", "arbitrary")

    partials = pl.pallas_call(
        kernel,
        out_shape=jax.ShapeDtypeStruct((num_cores, 3, SUBLANE, LANE), jnp.float32),
        grid_spec=pltpu.PrefetchScalarGridSpec(
            num_scalar_prefetch=0,
            grid=(num_cores, blocks_per_core),
            in_specs=[in_spec, in_spec],
            out_specs=out_spec,
        ),
        compiler_params=pltpu.CompilerParams(
            dimension_semantics=dim_sem,
            vmem_limit_bytes=VMEM_LIMIT_BYTES),
    )(x2, t2)

    # Final (tiny) cross-lane reduction: (num_cores, 3, 8, 128) -> (3,)
    sums = jnp.sum(partials, axis=(0, 2, 3))
    intersection, isum, tsum = sums[0], sums[1], sums[2]
    if tail is not None:
        intersection = intersection + tail[0]
        isum = isum + tail[1]
        tsum = tsum + tail[2]

    dice_coef = (2.0 * intersection + smooth) / (isum + tsum + smooth)
    return 1.0 - dice_coef


dice_loss_jit = jax.jit(dice_loss, static_argnames=("smooth",))


if __name__ == "__main__":
    key = jax.random.PRNGKey(0)
    k1, k2 = jax.random.split(key)

    # Small shapes consistent with a segmentation logit/target pair (NCHW).
    x = jax.random.normal(k1, (2, 4, 16, 16), dtype=jnp.float32)               # logits
    tgt = (jax.random.uniform(k2, (2, 4, 16, 16)) > 0.5).astype(jnp.float32)   # {0,1} mask

    loss = dice_loss_jit(x, tgt, smooth=1.0)
    loss = jax.block_until_ready(loss)

    # Sanity check against a pure-JAX reference (same math as the torch module).
    s = jax.nn.sigmoid(x).reshape(-1)
    tf = tgt.reshape(-1)
    ref = 1.0 - (2.0 * jnp.sum(s * tf) + 1.0) / (jnp.sum(s) + jnp.sum(tf) + 1.0)
    assert jnp.allclose(loss, ref, rtol=1e-5, atol=1e-5), (loss, ref)

    print("KERNEL_OK")
</pallas_src>

<mosaic_0001>
module attributes {stable_mosaic.version = 11 : i64} {
  func.func @kernel(%arg0: i32, %arg1: i32, %arg2: memref<16x128xf32, #tpu.memory_space<vmem>>, %arg3: memref<16x128xf32, #tpu.memory_space<vmem>>, %arg4: memref<1x3x8x128xf32, #tpu.memory_space<vmem>>) attributes {dimension_semantics = [#tpu.dimension_semantics<arbitrary>, #tpu.dimension_semantics<arbitrary>], iteration_bounds = array<i64: 1, 1>, scalar_prefetch = 0 : i64, scratch_operands = 0 : i64, tpu.core_type = #tpu.core_type<tc>, window_params = [{transform_indices = @transform_0, window_bounds = array<i64: 16, 128>}, {transform_indices = @transform_1, window_bounds = array<i64: 16, 128>}, {transform_indices = @transform_2, window_bounds = array<i64: 1, 3, 8, 128>}]} {
    %c0_i32 = arith.constant 0 : i32
    %0 = arith.cmpi eq, %arg1, %c0_i32 : i32
    %1 = arith.extui %0 : i1 to i32
    %c0_i32_0 = arith.constant 0 : i32
    %2 = arith.cmpi ne, %1, %c0_i32_0 : i32
    scf.if %2 {
      %cst_11 = arith.constant 0.000000e+00 : f32
      %22 = vector.broadcast %cst_11 : f32 to vector<1x3x8x128xf32>
      %c0_12 = arith.constant 0 : index
      %c0_13 = arith.constant 0 : index
      %c0_14 = arith.constant 0 : index
      %c0_15 = arith.constant 0 : index
      %23 = vector.load %arg4[%c0_12, %c0_13, %c0_14, %c0_15] : memref<1x3x8x128xf32, #tpu.memory_space<vmem>>, vector<1x3x8x128xf32>
      tpu.vector_store %arg4[%c0_12, %c0_13, %c0_14, %c0_15], %22 {strides = array<i32>} : memref<1x3x8x128xf32, #tpu.memory_space<vmem>>, vector<1x3x8x128xf32>,
    } else {
    }
    %c0 = arith.constant 0 : index
    %c0_1 = arith.constant 0 : index
    %3 = vector.load %arg2[%c0, %c0_1] : memref<16x128xf32, #tpu.memory_space<vmem>>, vector<16x128xf32>
    %c0_2 = arith.constant 0 : index
    %c0_3 = arith.constant 0 : index
    %4 = vector.load %arg3[%c0_2, %c0_3] : memref<16x128xf32, #tpu.memory_space<vmem>>, vector<16x128xf32>
    %cst = arith.constant 5.000000e-01 : f32
    %5 = vector.broadcast %cst : f32 to vector<16x128xf32>
    %6 = arith.mulf %5, %3 : vector<16x128xf32>
    %7 = math.tanh %6 : vector<16x128xf32>
    %cst_4 = arith.constant 5.000000e-01 : f32
    %8 = vector.broadcast %cst_4 : f32 to vector<16x128xf32>
    %9 = arith.mulf %8, %7 : vector<16x128xf32>
    %cst_5 = arith.constant 5.000000e-01 : f32
    %10 = vector.broadcast %cst_5 : f32 to vector<16x128xf32>
    %11 = arith.addf %9, %10 : vector<16x128xf32>
    %c1_i32 = arith.constant 1 : i32
    %12 = arith.muli %arg0, %c1_i32 : i32
    %13 = arith.addi %12, %arg1 : i32
    %c16_i32 = arith.constant 16 : i32
    %14 = arith.muli %13, %c16_i32 : i32
    %c16_i32_6 = arith.constant 16 : i32
    %15 = arith.subi %c16_i32_6, %14 : i32
    %c16_i32_7 = arith.constant 16 : i32
    %16 = arith.cmpi sge, %15, %c16_i32_7 : i32
    %17 = arith.extui %16 : i1 to i32
    %c0_i32_8 = arith.constant 0 : i32
    %18 = arith.cmpi ne, %17, %c0_i32_8 : i32
    scf.if %18 {
      %c0_11 = arith.constant 0 : index
      %c0_12 = arith.constant 0 : index
      %c0_13 = arith.constant 0 : index
      %c0_14 = arith.constant 0 : index
      %22 = vector.load %arg4[%c0_11, %c0_12, %c0_13, %c0_14] : memref<1x3x8x128xf32, #tpu.memory_space<vmem>>, vector<1x1x8x128xf32>
      %23 = vector.shape_cast %22 : vector<1x1x8x128xf32> to vector<8x128xf32>
      %24 = arith.mulf %11, %4 : vector<16x128xf32>
      %25 = vector.shape_cast %24 : vector<16x128xf32> to vector<2x8x128xf32>
      %cst_15 = arith.constant dense<0.000000e+00> : vector<8x128xf32>
      %26 = vector.multi_reduction <add>, %25, %cst_15 [0] : vector<2x8x128xf32> to vector<8x128xf32>
      %27 = arith.addf %23, %26 : vector<8x128xf32>
      %c0_16 = arith.constant 0 : index
      %c0_17 = arith.constant 0 : index
      %c0_18 = arith.constant 0 : index
      %c0_19 = arith.constant 0 : index
      %28 = vector.load %arg4[%c0_16, %c0_17, %c0_18, %c0_19] : memref<1x3x8x128xf32, #tpu.memory_space<vmem>>, vector<1x1x8x128xf32>
      %29 = vector.shape_cast %28 : vector<1x1x8x128xf32> to vector<8x128xf32>
      %30 = vector.shape_cast %27 : vector<8x128xf32> to vector<1x1x8x128xf32>
      tpu.vector_store %arg4[%c0_16, %c0_17, %c0_18, %c0_19], %30 {strides = array<i32>} : memref<1x3x8x128xf32, #tpu.memory_space<vmem>>, vector<1x1x8x128xf32>,
      %c0_20 = arith.constant 0 : index
      %c1 = arith.constant 1 : index
      %c0_21 = arith.constant 0 : index
      %c0_22 = arith.constant 0 : index
      %31 = vector.load %arg4[%c0_20, %c1, %c0_21, %c0_22] : memref<1x3x8x128xf32, #tpu.memory_space<vmem>>, vector<1x1x8x128xf32>
      %32 = vector.shape_cast %31 : vector<1x1x8x128xf32> to vector<8x128xf32>
      %33 = vector.shape_cast %11 : vector<16x128xf32> to vector<2x8x128xf32>
      %cst_23 = arith.constant dense<0.000000e+00> : vector<8x128xf32>
      %34 = vector.multi_reduction <add>, %33, %cst_23 [0] : vector<2x8x128xf32> to vector<8x128xf32>
      %35 = arith.addf %32, %34 : vector<8x128xf32>
      %c0_24 = arith.constant 0 : index
      %c1_25 = arith.constant 1 : index
      %c0_26 = arith.constant 0 : index
      %c0_27 = arith.constant 0 : index
      %36 = vector.load %arg4[%c0_24, %c1_25, %c0_26, %c0_27] : memref<1x3x8x128xf32, #tpu.memory_space<vmem>>, vector<1x1x8x128xf32>
      %37 = vector.shape_cast %36 : vector<1x1x8x128xf32> to vector<8x128xf32>
      %38 = vector.shape_cast %35 : vector<8x128xf32> to vector<1x1x8x128xf32>
      tpu.vector_store %arg4[%c0_24, %c1_25, %c0_26, %c0_27], %38 {strides = array<i32>} : memref<1x3x8x128xf32, #tpu.memory_space<vmem>>, vector<1x1x8x128xf32>,
      %c0_28 = arith.constant 0 : index
      %c2 = arith.constant 2 : index
      %c0_29 = arith.constant 0 : index
      %c0_30 = arith.constant 0 : index
      %39 = vector.load %arg4[%c0_28, %c2, %c0_29, %c0_30] : memref<1x3x8x128xf32, #tpu.memory_space<vmem>>, vector<1x1x8x128xf32>
      %40 = vector.shape_cast %39 : vector<1x1x8x128xf32> to vector<8x128xf32>
      %41 = vector.shape_cast %4 : vector<16x128xf32> to vector<2x8x128xf32>
      %cst_31 = arith.constant dense<0.000000e+00> : vector<8x128xf32>
      %42 = vector.multi_reduction <add>, %41, %cst_31 [0] : vector<2x8x128xf32> to vector<8x128xf32>
      %43 = arith.addf %40, %42 : vector<8x128xf32>
      %c0_32 = arith.constant 0 : index
      %c2_33 = arith.constant 2 : index
      %c0_34 = arith.constant 0 : index
      %c0_35 = arith.constant 0 : index
      %44 = vector.load %arg4[%c0_32, %c2_33, %c0_34, %c0_35] : memref<1x3x8x128xf32, #tpu.memory_space<vmem>>, vector<1x1x8x128xf32>
      %45 = vector.shape_cast %44 : vector<1x1x8x128xf32> to vector<8x128xf32>
      %46 = vector.shape_cast %43 : vector<8x128xf32> to vector<1x1x8x128xf32>
      tpu.vector_store %arg4[%c0_32, %c2_33, %c0_34, %c0_35], %46 {strides = array<i32>} : memref<1x3x8x128xf32, #tpu.memory_space<vmem>>, vector<1x1x8x128xf32>,
    } else {
    }
    %c16_i32_9 = arith.constant 16 : i32
    %19 = arith.cmpi slt, %15, %c16_i32_9 : i32
    %20 = arith.extui %19 : i1 to i32
    %c0_i32_10 = arith.constant 0 : i32
    %21 = arith.cmpi ne, %20, %c0_i32_10 : i32
    scf.if %21 {
      %22 = tpu.iota {dimensions = array<i32: 0>} : vector<16x128xi32>
      %23 = vector.broadcast %15 : i32 to vector<16x128xi32>
      %24 = arith.cmpi slt, %22, %23 : vector<16x128xi32>
      %cst_11 = arith.constant 0.000000e+00 : f32
      %25 = vector.broadcast %cst_11 : f32 to vector<16x128xf32>
      %26 = arith.select %24, %11, %25 : vector<16x128xi1>, vector<16x128xf32>
      %cst_12 = arith.constant 0.000000e+00 : f32
      %27 = vector.broadcast %cst_12 : f32 to vector<16x128xf32>
      %28 = arith.select %24, %4, %27 : vector<16x128xi1>, vector<16x128xf32>
      %c0_13 = arith.constant 0 : index
      %c0_14 = arith.constant 0 : index
      %c0_15 = arith.constant 0 : index
      %c0_16 = arith.constant 0 : index
      %29 = vector.load %arg4[%c0_13, %c0_14, %c0_15, %c0_16] : memref<1x3x8x128xf32, #tpu.memory_space<vmem>>, vector<1x1x8x128xf32>
      %30 = vector.shape_cast %29 : vector<1x1x8x128xf32> to vector<8x128xf32>
      %31 = arith.mulf %26, %28 : vector<16x128xf32>
      %32 = vector.shape_cast %31 : vector<16x128xf32> to vector<2x8x128xf32>
      %cst_17 = arith.constant dense<0.000000e+00> : vector<8x128xf32>
      %33 = vector.multi_reduction <add>, %32, %cst_17 [0] : vector<2x8x128xf32> to vector<8x128xf32>
      %34 = arith.addf %30, %33 : vector<8x128xf32>
      %c0_18 = arith.constant 0 : index
      %c0_19 = arith.constant 0 : index
      %c0_20 = arith.constant 0 : index
      %c0_21 = arith.constant 0 : index
      %35 = vector.load %arg4[%c0_18, %c0_19, %c0_20, %c0_21] : memref<1x3x8x128xf32, #tpu.memory_space<vmem>>, vector<1x1x8x128xf32>
      %36 = vector.shape_cast %35 : vector<1x1x8x128xf32> to vector<8x128xf32>
      %37 = vector.shape_cast %34 : vector<8x128xf32> to vector<1x1x8x128xf32>
      tpu.vector_store %arg4[%c0_18, %c0_19, %c0_20, %c0_21], %37 {strides = array<i32>} : memref<1x3x8x128xf32, #tpu.memory_space<vmem>>, vector<1x1x8x128xf32>,
      %c0_22 = arith.constant 0 : index
      %c1 = arith.constant 1 : index
      %c0_23 = arith.constant 0 : index
      %c0_24 = arith.constant 0 : index
      %38 = vector.load %arg4[%c0_22, %c1, %c0_23, %c0_24] : memref<1x3x8x128xf32, #tpu.memory_space<vmem>>, vector<1x1x8x128xf32>
      %39 = vector.shape_cast %38 : vector<1x1x8x128xf32> to vector<8x128xf32>
      %40 = vector.shape_cast %26 : vector<16x128xf32> to vector<2x8x128xf32>
      %cst_25 = arith.constant dense<0.000000e+00> : vector<8x128xf32>
      %41 = vector.multi_reduction <add>, %40, %cst_25 [0] : vector<2x8x128xf32> to vector<8x128xf32>
      %42 = arith.addf %39, %41 : vector<8x128xf32>
      %c0_26 = arith.constant 0 : index
      %c1_27 = arith.constant 1 : index
      %c0_28 = arith.constant 0 : index
      %c0_29 = arith.constant 0 : index
      %43 = vector.load %arg4[%c0_26, %c1_27, %c0_28, %c0_29] : memref<1x3x8x128xf32, #tpu.memory_space<vmem>>, vector<1x1x8x128xf32>
      %44 = vector.shape_cast %43 : vector<1x1x8x128xf32> to vector<8x128xf32>
      %45 = vector.shape_cast %42 : vector<8x128xf32> to vector<1x1x8x128xf32>
      tpu.vector_store %arg4[%c0_26, %c1_27, %c0_28, %c0_29], %45 {strides = array<i32>} : memref<1x3x8x128xf32, #tpu.memory_space<vmem>>, vector<1x1x8x128xf32>,
      %c0_30 = arith.constant 0 : index
      %c2 = arith.constant 2 : index
      %c0_31 = arith.constant 0 : index
      %c0_32 = arith.constant 0 : index
      %46 = vector.load %arg4[%c0_30, %c2, %c0_31, %c0_32] : memref<1x3x8x128xf32, #tpu.memory_space<vmem>>, vector<1x1x8x128xf32>
      %47 = vector.shape_cast %46 : vector<1x1x8x128xf32> to vector<8x128xf32>
      %48 = vector.shape_cast %28 : vector<16x128xf32> to vector<2x8x128xf32>
      %cst_33 = arith.constant dense<0.000000e+00> : vector<8x128xf32>
      %49 = vector.multi_reduction <add>, %48, %cst_33 [0] : vector<2x8x128xf32> to vector<8x128xf32>
      %50 = arith.addf %47, %49 : vector<8x128xf32>
      %c0_34 = arith.constant 0 : index
      %c2_35 = arith.constant 2 : index
      %c0_36 = arith.constant 0 : index
      %c0_37 = arith.constant 0 : index
      %51 = vector.load %arg4[%c0_34, %c2_35, %c0_36, %c0_37] : memref<1x3x8x128xf32, #tpu.memory_space<vmem>>, vector<1x1x8x128xf32>
      %52 = vector.shape_cast %51 : vector<1x1x8x128xf32> to vector<8x128xf32>
      %53 = vector.shape_cast %50 : vector<8x128xf32> to vector<1x1x8x128xf32>
      tpu.vector_store %arg4[%c0_34, %c2_35, %c0_36, %c0_37], %53 {strides = array<i32>} : memref<1x3x8x128xf32, #tpu.memory_space<vmem>>, vector<1x1x8x128xf32>,
    } else {
    }
    return
  }
  func.func @transform_0(%arg0: i32, %arg1: i32) -> (i32, i32) {
    %c1_i32 = arith.constant 1 : i32
    %0 = arith.muli %arg0, %c1_i32 : i32
    %1 = arith.addi %0, %arg1 : i32
    %c0_i32 = arith.constant 0 : i32
    %c0_i32_0 = arith.constant 0 : i32
    return %1, %c0_i32 : i32, i32
  }
  func.func @transform_1(%arg0: i32, %arg1: i32) -> (i32, i32) {
    %c1_i32 = arith.constant 1 : i32
    %0 = arith.muli %arg0, %c1_i32 : i32
    %1 = arith.addi %0, %arg1 : i32
    %c0_i32 = arith.constant 0 : i32
    %c0_i32_0 = arith.constant 0 : i32
    return %1, %c0_i32 : i32, i32
  }
  func.func @transform_2(%arg0: i32, %arg1: i32) -> (i32, i32, i32, i32) {
    %c0_i32 = arith.constant 0 : i32
    %c0_i32_0 = arith.constant 0 : i32
    %c0_i32_1 = arith.constant 0 : i32
    %c0_i32_2 = arith.constant 0 : i32
    return %arg0, %c0_i32, %c0_i32_0, %c0_i32_1 : i32, i32, i32, i32
  }
}

</mosaic_0001>

<llo_original>
// kernel: dice_loss.1
$region0: #{dice_loss.1}
  #allocation0 [shape = 'u32[]', space=smem, size = 0x4, offset = 0x4, fixed_abs, tag = 'smem constant byte address 0x4 - core index']
  #allocation1 [shape = 'u32[144,128]{1,0:T(1,128)}', space=vmem, size = 0x12000, scoped, tag = 'internal scratch']
  %s0 = inlined_call_operand.vmem [shape: f32[16,128], index: 0, kind: input, shape index: {}]
  %s1 = inlined_call_operand.vmem [shape: f32[16,128], index: 1, kind: input, shape index: {}]
  %s2 = inlined_call_operand.vmem [shape: f32[1,3,8,128], index: 2, kind: output, shape index: {}]
  %s3 = sld [smem:[#allocation0]]
  $region30: #{dice_loss.1} parent=0
    _
  %s5 = ssub.s32 1, %s3
  %s6 = scalar_select 0, %s5, %s3
  // Predicated region
  $region2: #{dice_loss.1} parent=0 // pred_check
    _
  $region3: #{dice_loss.1} parent=0 // pred_check_branch
    %8 = sbr.rel (0) target = $region5
  $region4: #{dice_loss.1} parent=0 // pred_region
    %s9 = sadd.s32 0, 0
    %s10 = smul.u32 2, %s9
    %p11 = scmp.lt.s32.totalorder %s10, 1
    %s12 = scalar_select %p11, %s10, 1
    %s13 = smul.addr %s12, 8
    %s14 = scalar_lea.vmem %s0, %s13
    %s15 = sadd.s32 0, 0
    %s16 = smul.u32 2, %s15
  $region5: #{dice_loss.1} parent=0 // pred_fallthru
    _
  // Predicated region
  $region6: #{dice_loss.1} parent=0 // pred_check
    _
  $region7: #{dice_loss.1} parent=0 // pred_check_branch
    %18 = sbr.rel (0) target = $region9
  $region8: #{dice_loss.1} parent=0 // pred_region
    %s19 = sadd.s32 0, 0
    %s20 = smul.u32 2, %s19
    %p21 = scmp.lt.s32.totalorder %s20, 1
    %s22 = scalar_select %p21, %s20, 1
    %s23 = smul.addr %s22, 8
    %s24 = scalar_lea.vmem %s1, %s23
    %s25 = sadd.s32 0, 0
    %s26 = smul.u32 2, %s25
  $region9: #{dice_loss.1} parent=0 // pred_fallthru
    _
  %s27 = sadd.s32 0, 0
  %s28 = smul.u32 2, %s27
  %p29 = scmp.lt.s32.totalorder %s28, 1
  %s30 = scalar_select %p29, %s28, 1
  %s31 = smul.addr %s30, 8
  %s32 = scalar_lea.vmem %s0, %s31
  %s33 = sadd.s32 0, 0
  %s34 = smul.u32 2, %s33
  %p35 = scmp.lt.s32.totalorder %s34, 1
  %s36 = scalar_select %p35, %s34, 1
  %s37 = smul.addr %s36, 8
  %s38 = scalar_lea.vmem %s1, %s37
  %s39 = sadd.s32 0, 0
  %s40 = smul.u32 2, %s39
  %p41 = scmp.lt.s32.totalorder %s40, 1
  %s42 = scalar_select %p41, %s40, 1
  %s43 = smul.addr %s42, 8
  %s44 = scalar_lea.vmem %s0, %s43
  %s45 = sadd.s32 0, 0
  %s46 = smul.u32 2, %s45
  %s47 = sadd.s32 0, 0
  %s48 = smul.u32 2, %s47
  %p49 = scmp.lt.s32.totalorder %s48, 1
  %s50 = scalar_select %p49, %s48, 1
  %s51 = smul.addr %s50, 8
  %s52 = scalar_lea.vmem %s1, %s51
  %s53 = sadd.s32 0, 0
  %s54 = smul.u32 2, %s53
  %p55 = scmp.eq.s32.totalorder 0, 0
  // Predicated region
  $region10: #{dice_loss.1} parent=0 // pred_check
    %p56 = pneg %p55
  $region11: #{dice_loss.1} parent=0 // pred_check_branch
    %58 = sbr.rel (%p56) target = $region13
  $region12: #{dice_loss.1} parent=0 // pred_region
    %59 = vst [vmem:[%s2] sm:$0xff] 0.0
    %60 = vst [vmem:[%s2 + $0x8] sm:$0xff] 0.0
    %61 = vst [vmem:[%s2 + $0x10] sm:$0xff] 0.0
  $region13: #{dice_loss.1} parent=0 // pred_fallthru
    _
  %v62 = vld [vmem:[%s44] sm:$0xff]
  %v63 = vld [vmem:[%s44 + $0x8] sm:$0xff]
  %v64 = vld [vmem:[%s52] sm:$0xff]
  %v65 = vld [vmem:[%s52 + $0x8] sm:$0xff]
  %v66 = vmul.f32 %v62, 0.5
  %v67 = vmul.f32 %v63, 0.5
  %v68 = vtanh.pop %v66
  %v69 = vtanh.pop %v67
  %v70 = vmul.f32 %v68, 0.5
  %v71 = vmul.f32 %v69, 0.5
  %v72 = vadd.f32 %v70, 0.5
  %v73 = vadd.f32 %v71, 0.5
  %s74 = sadd.s32 0, 0
  %s75 = smul.u32 %s74, 16
  %s76 = ssub.s32 16, %s75
  %p77 = scmp.ge.s32.totalorder %s76, 16
  // Predicated region
  $region14: #{dice_loss.1} parent=0 // pred_check
    %p78 = pneg %p77
  $region15: #{dice_loss.1} parent=0 // pred_check_branch
    %80 = sbr.rel (%p78) target = $region17
  $region16: #{dice_loss.1} parent=0 // pred_region
    %v81 = vld [vmem:[%s2] sm:$0xff]
    %v82 = vmul.f32 %v72, %v64
    %v83 = vmul.f32 %v73, %v65
    %v84 = vadd.f32 %v82, %v83
    %v85 = vadd.f32 %v81, %v84
    %86 = vst [vmem:[%s2] sm:$0xff] %v85
    %s87 = scalar_lea.vmem %s2, 8
    %v88 = vld [vmem:[%s87] sm:$0xff]
    %v89 = vadd.f32 %v72, %v73
    %v90 = vadd.f32 %v88, %v89
    %91 = vst [vmem:[%s87] sm:$0xff] %v90
    %s92 = scalar_lea.vmem %s2, 16
    %v93 = vld [vmem:[%s92] sm:$0xff]
    %v94 = vadd.f32 %v64, %v65
    %v95 = vadd.f32 %v93, %v94
    %96 = vst [vmem:[%s92] sm:$0xff] %v95
  $region17: #{dice_loss.1} parent=0 // pred_fallthru
    _
  %p97 = scmp.lt.s32.totalorder %s76, 16
  // Predicated region
  $region18: #{dice_loss.1} parent=0 // pred_check
    %p98 = pneg %p97
  $region19: #{dice_loss.1} parent=0 // pred_check_branch
    %100 = sbr.rel (%p98) target = $region21
  $region20: #{dice_loss.1} parent=0 // pred_region
    %v101 = vlaneseq
    %v102 = vshrl.u32 %v101, 7
    %v103 = vadd.s32 %v102, 8
    %v104 = vstv %s76
    %vm105 = vcmp.lt.s32.totalorder %v102, %v104
    %vm106 = vcmp.lt.s32.totalorder %v103, %v104
    %v107 = vsel %vm105, %v72, 0.0
    %v108 = vsel %vm106, %v73, 0.0
    %v109 = vsel %vm105, %v64, 0.0
    %v110 = vsel %vm106, %v65, 0.0
    %v111 = vld [vmem:[%s2] sm:$0xff]
    %v112 = vmul.f32 %v107, %v109
    %v113 = vmul.f32 %v108, %v110
    %v114 = vadd.f32 %v112, %v113
    %v115 = vadd.f32 %v111, %v114
    %116 = vst [vmem:[%s2] sm:$0xff] %v115
    %s117 = scalar_lea.vmem %s2, 8
    %v118 = vld [vmem:[%s117] sm:$0xff]
    %v119 = vadd.f32 %v107, %v108
    %v120 = vadd.f32 %v118, %v119
    %121 = vst [vmem:[%s117] sm:$0xff] %v120
    %s122 = scalar_lea.vmem %s2, 16
    %v123 = vld [vmem:[%s122] sm:$0xff]
    %v124 = vadd.f32 %v109, %v110
    %v125 = vadd.f32 %v123, %v124
    %126 = vst [vmem:[%s122] sm:$0xff] %v125
  $region21: #{dice_loss.1} parent=0 // pred_fallthru
    _
  // Predicated region
  $region22: #{dice_loss.1} parent=0 // pred_check
    _
  $region23: #{dice_loss.1} parent=0 // pred_check_branch
    %128 = sbr.rel (0) target = $region25
  $region24: #{dice_loss.1} parent=0 // pred_region
    _
  $region25: #{dice_loss.1} parent=0 // pred_fallthru
    _
  // Predicated region
  $region26: #{dice_loss.1} parent=0 // pred_check
    _
  $region27: #{dice_loss.1} parent=0 // pred_check_branch
    %130 = sbr.rel (0) target = $region29
  $region28: #{dice_loss.1} parent=0 // pred_region
    _
  $region29: #{dice_loss.1} parent=0 // pred_fallthru
    _

</llo_original>
